<compile_context>
chip_gen: v7x
topology: tpu7x:2x2x1
jax: 0.10.0
libtpu: 0.0.40
codegen_flags: <defaults>
</compile_context>

<pallas_src>
import jax
import jax.numpy as jnp
from jax.experimental import pallas as pl
from jax.experimental.pallas import tpu as pltpu


def _make_cnn_block_kernel(C_in, C_out, K, stride, s_eff, L_out, P,
                           negative_slope, use_mxu):
    """P = pool taps (1 if no maxpool); s_eff = stride * pool_stride."""

    def kernel(x_ref, w_ref, b_ref, o_ref):
        # x_ref: (s_eff * C_in, Lp)   phase-major polyphase input
        # w_ref: (K, C_out, C_in)     per-tap weight slabs
        # b_ref: (C_out, 1)
        # o_ref: (C_out, L_out)
        bias_b = jnp.broadcast_to(b_ref[...], (C_out, L_out))     # hoisted once
        w_taps = [w_ref[k] for k in range(K)]                     # (C_out, C_in) each

        res = None
        for j in range(P):                       # pool taps (fused max pool)
            acc = bias_b
            for k in range(K):                   # kernel taps
                off = stride * j + k             # input offset of this tap
                r, q = off % s_eff, off // s_eff
                if use_mxu:
                    # Contiguous (C_in, L_out) slice of one polyphase phase.
                    x_tap = x_ref[pl.ds(r * C_in, C_in), pl.ds(q, L_out)]
                    acc = acc + jnp.dot(w_taps[k], x_tap,
                                        preferred_element_type=jnp.float32)
                else:
                    for ci in range(C_in):
                        xs = x_ref[pl.ds(r * C_in + ci, 1), pl.ds(q, L_out)]
                        wc = w_taps[k][:, ci:ci + 1]             # (C_out, 1)
                        acc = acc + wc * xs      # (C_out,1)*(1,L) broadcast FMA
            res = acc if res is None else jnp.maximum(res, acc)

        # LeakyReLU (monotonic -> commutes with the max pool above).
        res = jnp.where(res > 0, res, negative_slope * res)
        o_ref[...] = res.astype(o_ref.dtype)

    return kernel


def cnn_block_forward(x_ncl, weight, bias, *, kernel_size=3, stride=1,
                      padding=0, maxpool=False, maxpool_k=2,
                      negative_slope=0.01):
    """Matches torch CnnBlock.forward; x_ncl is (B, C_in, L) like nn.Conv1d."""
    B, C_in, L = x_ncl.shape
    C_out = weight.shape[0]
    K = kernel_size

    x = x_ncl.astype(jnp.float32)
    if padding > 0:
        x = jnp.pad(x, ((0, 0), (0, 0), (padding, padding)))
        L = L + 2 * padding

    L_conv = (L - K) // stride + 1
    if maxpool:
        pool_stride = 2                          # nn.MaxPool1d(maxpool_k, stride=2)
        L_out = (L_conv - maxpool_k) // pool_stride + 1
        P = maxpool_k
        s_eff = stride * pool_stride
    else:
        L_out = L_conv
        P = 1
        s_eff = stride

    # Phase-major polyphase split of the sequence axis (only when decimating):
    #   x[b, ci, s_eff*m + r] -> x_poly[b, r*C_in + ci, m]
    if s_eff > 1:
        Lp = -(-L // s_eff)                      # ceil(L / s_eff)
        pad_l = Lp * s_eff - L
        if pad_l:
            x = jnp.pad(x, ((0, 0), (0, 0), (0, pad_l)))
        x_in = (x.reshape(B, C_in, Lp, s_eff)
                 .transpose(0, 3, 1, 2)
                 .reshape(B, s_eff * C_in, Lp))
    else:
        Lp = L
        x_in = x
    R = s_eff * C_in

    # (C_out, C_in, K) -> (K, C_out, C_in): each tap's weights are a contiguous slab.
    w_taps = jnp.transpose(weight.astype(jnp.float32), (2, 0, 1))
    b_col = bias.reshape(C_out, 1).astype(jnp.float32)

    # Channel contraction on the MXU once it is wide enough to be worth a
    # systolic pass; tiny channel counts stay on the VPU broadcast-FMA path.
    use_mxu = C_in >= 8

    kernel = _make_cnn_block_kernel(C_in, C_out, K, stride, s_eff, L_out, P,
                                    negative_slope, use_mxu)

    out = pl.pallas_call(
        kernel,
        out_shape=jax.ShapeDtypeStruct((B, C_out, L_out), jnp.float32),
        grid_spec=pltpu.PrefetchScalarGridSpec(
            num_scalar_prefetch=0,
            grid=(B,),
            in_specs=[
                pl.BlockSpec((pl.Squeezed(), R, Lp), lambda b: (b, 0, 0)),
                pl.BlockSpec((K, C_out, C_in), lambda b: (0, 0, 0)),
                pl.BlockSpec((C_out, 1), lambda b: (0, 0)),
            ],
            out_specs=pl.BlockSpec((pl.Squeezed(), C_out, L_out),
                                   lambda b: (b, 0, 0)),
        ),
        compiler_params=pltpu.CompilerParams(
            dimension_semantics=("parallel",)),
    )(x_in, w_taps, b_col)
    return out


def _reference_forward(x_ncl, weight, bias, *, kernel_size=3, stride=1,
                       padding=0, maxpool=False, maxpool_k=2,
                       negative_slope=0.01):
    out = jax.lax.conv_general_dilated(
        x_ncl.astype(jnp.float32), weight.astype(jnp.float32),
        window_strides=(stride,), padding=[(padding, padding)],
        dimension_numbers=("NCH", "OIH", "NCH"),
        precision=jax.lax.Precision.HIGHEST)
    out = out + bias[None, :, None]
    out = jnp.where(out > 0, out, negative_slope * out)
    if maxpool:
        out = jax.lax.reduce_window(out, -jnp.inf, jax.lax.max,
                                    (1, 1, maxpool_k), (1, 1, 2), "VALID")
    return out


if __name__ == "__main__":
    key = jax.random.PRNGKey(0)
    B, L = 2, 16

    configs = [
        # (C_in, C_out, cfg)  -- VPU broadcast-FMA path (C_in < 8)
        (4, 8, dict(kernel_size=3, stride=1, padding=0, maxpool=True, maxpool_k=2)),
        (4, 8, dict(kernel_size=3, stride=2, padding=0, maxpool=False)),
        (4, 8, dict(kernel_size=3, stride=1, padding=1, maxpool=True, maxpool_k=3)),
        # MXU per-tap matmul path (C_in >= 8)
        (16, 32, dict(kernel_size=3, stride=1, padding=1, maxpool=True, maxpool_k=2)),
        (16, 32, dict(kernel_size=5, stride=2, padding=2, maxpool=False)),
    ]
    for idx, (C_in, C_out, cfg) in enumerate(configs):
        kx, kw, kb = jax.random.split(jax.random.fold_in(key, idx), 3)
        K = cfg["kernel_size"]
        x = jax.random.normal(kx, (B, C_in, L), jnp.float32)
        # Deterministic PyTorch-style init: U(-1/sqrt(fan_in), +1/sqrt(fan_in)).
        bound = 1.0 / (C_in * K) ** 0.5
        w = jax.random.uniform(kw, (C_out, C_in, K), jnp.float32, -bound, bound)
        b = jax.random.uniform(kb, (C_out,), jnp.float32, -bound, bound)

        out = jax.block_until_ready(cnn_block_forward(x, w, b, **cfg))
        ref = _reference_forward(x, w, b, **cfg)
        assert out.shape == ref.shape, (cfg, out.shape, ref.shape)
        assert jnp.allclose(out, ref, atol=1e-4, rtol=1e-4), cfg
    print("KERNEL_OK")
</pallas_src>

<mosaic_0001>
module attributes {stable_mosaic.version = 11 : i64} {
  func.func @kernel(%arg0: i32, %arg1: memref<1x8x8xf32, #tpu.memory_space<vmem>>, %arg2: memref<3x8x4xf32, #tpu.memory_space<vmem>>, %arg3: memref<8x1xf32, #tpu.memory_space<vmem>>, %arg4: memref<1x8x7xf32, #tpu.memory_space<vmem>>) attributes {dimension_semantics = [#tpu.dimension_semantics<parallel>], iteration_bounds = array<i64: 2>, scalar_prefetch = 0 : i64, scratch_operands = 0 : i64, tpu.core_type = #tpu.core_type<tc>, window_params = [{transform_indices = @transform_0, window_bounds = array<i64: 1, 8, 8>}, {pipeline_mode = #tpu.pipeline_mode<synchronous>, transform_indices = @transform_1, window_bounds = array<i64: 3, 8, 4>}, {pipeline_mode = #tpu.pipeline_mode<synchronous>, transform_indices = @transform_2, window_bounds = array<i64: 8, 1>}, {transform_indices = @transform_3, window_bounds = array<i64: 1, 8, 7>}]} {
    %c0 = arith.constant 0 : index
    %c0_0 = arith.constant 0 : index
    %0 = vector.load %arg3[%c0, %c0_0] : memref<8x1xf32, #tpu.memory_space<vmem>>, vector<8x1xf32>
    %1 = vector.shape_cast %0 : vector<8x1xf32> to vector<8x1xf32>
    %2 = vector.broadcast %1 : vector<8x1xf32> to vector<8x7xf32>
    %c0_1 = arith.constant 0 : index
    %c0_2 = arith.constant 0 : index
    %c0_3 = arith.constant 0 : index
    %3 = vector.load %arg2[%c0_1, %c0_2, %c0_3] : memref<3x8x4xf32, #tpu.memory_space<vmem>>, vector<1x8x4xf32>
    %4 = vector.shape_cast %3 : vector<1x8x4xf32> to vector<8x4xf32>
    %c1 = arith.constant 1 : index
    %c0_4 = arith.constant 0 : index
    %c0_5 = arith.constant 0 : index
    %5 = vector.load %arg2[%c1, %c0_4, %c0_5] : memref<3x8x4xf32, #tpu.memory_space<vmem>>, vector<1x8x4xf32>
    %6 = vector.shape_cast %5 : vector<1x8x4xf32> to vector<8x4xf32>
    %c2 = arith.constant 2 : index
    %c0_6 = arith.constant 0 : index
    %c0_7 = arith.constant 0 : index
    %7 = vector.load %arg2[%c2, %c0_6, %c0_7] : memref<3x8x4xf32, #tpu.memory_space<vmem>>, vector<1x8x4xf32>
    %8 = vector.shape_cast %7 : vector<1x8x4xf32> to vector<8x4xf32>
    %c0_8 = arith.constant 0 : index
    %c0_9 = arith.constant 0 : index
    %c0_10 = arith.constant 0 : index
    %9 = vector.load %arg1[%c0_8, %c0_9, %c0_10] : memref<1x8x8xf32, #tpu.memory_space<vmem>>, vector<1x1x7xf32>
    %10 = vector.shape_cast %9 : vector<1x1x7xf32> to vector<1x7xf32>
    %11 = vector.extract_strided_slice %4 {offsets = [0, 0], sizes = [8, 1], strides = [1, 1]} : vector<8x4xf32> to vector<8x1xf32>
    %12 = vector.broadcast %11 : vector<8x1xf32> to vector<8x7xf32>
    %13 = vector.broadcast %10 : vector<1x7xf32> to vector<8x7xf32>
    %14 = arith.mulf %12, %13 : vector<8x7xf32>
    %15 = arith.addf %2, %14 : vector<8x7xf32>
    %c0_11 = arith.constant 0 : index
    %c1_12 = arith.constant 1 : index
    %c0_13 = arith.constant 0 : index
    %16 = vector.load %arg1[%c0_11, %c1_12, %c0_13] : memref<1x8x8xf32, #tpu.memory_space<vmem>>, vector<1x1x7xf32>
    %17 = vector.shape_cast %16 : vector<1x1x7xf32> to vector<1x7xf32>
    %18 = vector.extract_strided_slice %4 {offsets = [0, 1], sizes = [8, 1], strides = [1, 1]} : vector<8x4xf32> to vector<8x1xf32>
    %19 = vector.broadcast %18 : vector<8x1xf32> to vector<8x7xf32>
    %20 = vector.broadcast %17 : vector<1x7xf32> to vector<8x7xf32>
    %21 = arith.mulf %19, %20 : vector<8x7xf32>
    %22 = arith.addf %15, %21 : vector<8x7xf32>
    %c0_14 = arith.constant 0 : index
    %c2_15 = arith.constant 2 : index
    %c0_16 = arith.constant 0 : index
    %23 = vector.load %arg1[%c0_14, %c2_15, %c0_16] : memref<1x8x8xf32, #tpu.memory_space<vmem>>, vector<1x1x7xf32>
    %24 = vector.shape_cast %23 : vector<1x1x7xf32> to vector<1x7xf32>
    %25 = vector.extract_strided_slice %4 {offsets = [0, 2], sizes = [8, 1], strides = [1, 1]} : vector<8x4xf32> to vector<8x1xf32>
    %26 = vector.broadcast %25 : vector<8x1xf32> to vector<8x7xf32>
    %27 = vector.broadcast %24 : vector<1x7xf32> to vector<8x7xf32>
    %28 = arith.mulf %26, %27 : vector<8x7xf32>
    %29 = arith.addf %22, %28 : vector<8x7xf32>
    %c0_17 = arith.constant 0 : index
    %c3 = arith.constant 3 : index
    %c0_18 = arith.constant 0 : index
    %30 = vector.load %arg1[%c0_17, %c3, %c0_18] : memref<1x8x8xf32, #tpu.memory_space<vmem>>, vector<1x1x7xf32>
    %31 = vector.shape_cast %30 : vector<1x1x7xf32> to vector<1x7xf32>
    %32 = vector.extract_strided_slice %4 {offsets = [0, 3], sizes = [8, 1], strides = [1, 1]} : vector<8x4xf32> to vector<8x1xf32>
    %33 = vector.broadcast %32 : vector<8x1xf32> to vector<8x7xf32>
    %34 = vector.broadcast %31 : vector<1x7xf32> to vector<8x7xf32>
    %35 = arith.mulf %33, %34 : vector<8x7xf32>
    %36 = arith.addf %29, %35 : vector<8x7xf32>
    %c0_19 = arith.constant 0 : index
    %c4 = arith.constant 4 : index
    %c0_20 = arith.constant 0 : index
    %37 = vector.load %arg1[%c0_19, %c4, %c0_20] : memref<1x8x8xf32, #tpu.memory_space<vmem>>, vector<1x1x7xf32>
    %38 = vector.shape_cast %37 : vector<1x1x7xf32> to vector<1x7xf32>
    %39 = vector.extract_strided_slice %6 {offsets = [0, 0], sizes = [8, 1], strides = [1, 1]} : vector<8x4xf32> to vector<8x1xf32>
    %40 = vector.broadcast %39 : vector<8x1xf32> to vector<8x7xf32>
    %41 = vector.broadcast %38 : vector<1x7xf32> to vector<8x7xf32>
    %42 = arith.mulf %40, %41 : vector<8x7xf32>
    %43 = arith.addf %36, %42 : vector<8x7xf32>
    %c0_21 = arith.constant 0 : index
    %c5 = arith.constant 5 : index
    %c0_22 = arith.constant 0 : index
    %44 = vector.load %arg1[%c0_21, %c5, %c0_22] : memref<1x8x8xf32, #tpu.memory_space<vmem>>, vector<1x1x7xf32>
    %45 = vector.shape_cast %44 : vector<1x1x7xf32> to vector<1x7xf32>
    %46 = vector.extract_strided_slice %6 {offsets = [0, 1], sizes = [8, 1], strides = [1, 1]} : vector<8x4xf32> to vector<8x1xf32>
    %47 = vector.broadcast %46 : vector<8x1xf32> to vector<8x7xf32>
    %48 = vector.broadcast %45 : vector<1x7xf32> to vector<8x7xf32>
    %49 = arith.mulf %47, %48 : vector<8x7xf32>
    %50 = arith.addf %43, %49 : vector<8x7xf32>
    %c0_23 = arith.constant 0 : index
    %c6 = arith.constant 6 : index
    %c0_24 = arith.constant 0 : index
    %51 = vector.load %arg1[%c0_23, %c6, %c0_24] : memref<1x8x8xf32, #tpu.memory_space<vmem>>, vector<1x1x7xf32>
    %52 = vector.shape_cast %51 : vector<1x1x7xf32> to vector<1x7xf32>
    %53 = vector.extract_strided_slice %6 {offsets = [0, 2], sizes = [8, 1], strides = [1, 1]} : vector<8x4xf32> to vector<8x1xf32>
    %54 = vector.broadcast %53 : vector<8x1xf32> to vector<8x7xf32>
    %55 = vector.broadcast %52 : vector<1x7xf32> to vector<8x7xf32>
    %56 = arith.mulf %54, %55 : vector<8x7xf32>
    %57 = arith.addf %50, %56 : vector<8x7xf32>
    %c0_25 = arith.constant 0 : index
    %c7 = arith.constant 7 : index
    %c0_26 = arith.constant 0 : index
    %58 = vector.load %arg1[%c0_25, %c7, %c0_26] : memref<1x8x8xf32, #tpu.memory_space<vmem>>, vector<1x1x7xf32>
    %59 = vector.shape_cast %58 : vector<1x1x7xf32> to vector<1x7xf32>
    %60 = vector.extract_strided_slice %6 {offsets = [0, 3], sizes = [8, 1], strides = [1, 1]} : vector<8x4xf32> to vector<8x1xf32>
    %61 = vector.broadcast %60 : vector<8x1xf32> to vector<8x7xf32>
    %62 = vector.broadcast %59 : vector<1x7xf32> to vector<8x7xf32>
    %63 = arith.mulf %61, %62 : vector<8x7xf32>
    %64 = arith.addf %57, %63 : vector<8x7xf32>
    %c0_27 = arith.constant 0 : index
    %c0_28 = arith.constant 0 : index
    %c1_29 = arith.constant 1 : index
    %65 = vector.load %arg1[%c0_27, %c0_28, %c1_29] : memref<1x8x8xf32, #tpu.memory_space<vmem>>, vector<1x1x7xf32>
    %66 = vector.shape_cast %65 : vector<1x1x7xf32> to vector<1x7xf32>
    %67 = vector.extract_strided_slice %8 {offsets = [0, 0], sizes = [8, 1], strides = [1, 1]} : vector<8x4xf32> to vector<8x1xf32>
    %68 = vector.broadcast %67 : vector<8x1xf32> to vector<8x7xf32>
    %69 = vector.broadcast %66 : vector<1x7xf32> to vector<8x7xf32>
    %70 = arith.mulf %68, %69 : vector<8x7xf32>
    %71 = arith.addf %64, %70 : vector<8x7xf32>
    %c0_30 = arith.constant 0 : index
    %c1_31 = arith.constant 1 : index
    %c1_32 = arith.constant 1 : index
    %72 = vector.load %arg1[%c0_30, %c1_31, %c1_32] : memref<1x8x8xf32, #tpu.memory_space<vmem>>, vector<1x1x7xf32>
    %73 = vector.shape_cast %72 : vector<1x1x7xf32> to vector<1x7xf32>
    %74 = vector.extract_strided_slice %8 {offsets = [0, 1], sizes = [8, 1], strides = [1, 1]} : vector<8x4xf32> to vector<8x1xf32>
    %75 = vector.broadcast %74 : vector<8x1xf32> to vector<8x7xf32>
    %76 = vector.broadcast %73 : vector<1x7xf32> to vector<8x7xf32>
    %77 = arith.mulf %75, %76 : vector<8x7xf32>
    %78 = arith.addf %71, %77 : vector<8x7xf32>
    %c0_33 = arith.constant 0 : index
    %c2_34 = arith.constant 2 : index
    %c1_35 = arith.constant 1 : index
    %79 = vector.load %arg1[%c0_33, %c2_34, %c1_35] : memref<1x8x8xf32, #tpu.memory_space<vmem>>, vector<1x1x7xf32>
    %80 = vector.shape_cast %79 : vector<1x1x7xf32> to vector<1x7xf32>
    %81 = vector.extract_strided_slice %8 {offsets = [0, 2], sizes = [8, 1], strides = [1, 1]} : vector<8x4xf32> to vector<8x1xf32>
    %82 = vector.broadcast %81 : vector<8x1xf32> to vector<8x7xf32>
    %83 = vector.broadcast %80 : vector<1x7xf32> to vector<8x7xf32>
    %84 = arith.mulf %82, %83 : vector<8x7xf32>
    %85 = arith.addf %78, %84 : vector<8x7xf32>
    %c0_36 = arith.constant 0 : index
    %c3_37 = arith.constant 3 : index
    %c1_38 = arith.constant 1 : index
    %86 = vector.load %arg1[%c0_36, %c3_37, %c1_38] : memref<1x8x8xf32, #tpu.memory_space<vmem>>, vector<1x1x7xf32>
    %87 = vector.shape_cast %86 : vector<1x1x7xf32> to vector<1x7xf32>
    %88 = vector.extract_strided_slice %8 {offsets = [0, 3], sizes = [8, 1], strides = [1, 1]} : vector<8x4xf32> to vector<8x1xf32>
    %89 = vector.broadcast %88 : vector<8x1xf32> to vector<8x7xf32>
    %90 = vector.broadcast %87 : vector<1x7xf32> to vector<8x7xf32>
    %91 = arith.mulf %89, %90 : vector<8x7xf32>
    %92 = arith.addf %85, %91 : vector<8x7xf32>
    %c0_39 = arith.constant 0 : index
    %c4_40 = arith.constant 4 : index
    %c0_41 = arith.constant 0 : index
    %93 = vector.load %arg1[%c0_39, %c4_40, %c0_41] : memref<1x8x8xf32, #tpu.memory_space<vmem>>, vector<1x1x7xf32>
    %94 = vector.shape_cast %93 : vector<1x1x7xf32> to vector<1x7xf32>
    %95 = vector.extract_strided_slice %4 {offsets = [0, 0], sizes = [8, 1], strides = [1, 1]} : vector<8x4xf32> to vector<8x1xf32>
    %96 = vector.broadcast %95 : vector<8x1xf32> to vector<8x7xf32>
    %97 = vector.broadcast %94 : vector<1x7xf32> to vector<8x7xf32>
    %98 = arith.mulf %96, %97 : vector<8x7xf32>
    %99 = arith.addf %2, %98 : vector<8x7xf32>
    %c0_42 = arith.constant 0 : index
    %c5_43 = arith.constant 5 : index
    %c0_44 = arith.constant 0 : index
    %100 = vector.load %arg1[%c0_42, %c5_43, %c0_44] : memref<1x8x8xf32, #tpu.memory_space<vmem>>, vector<1x1x7xf32>
    %101 = vector.shape_cast %100 : vector<1x1x7xf32> to vector<1x7xf32>
    %102 = vector.extract_strided_slice %4 {offsets = [0, 1], sizes = [8, 1], strides = [1, 1]} : vector<8x4xf32> to vector<8x1xf32>
    %103 = vector.broadcast %102 : vector<8x1xf32> to vector<8x7xf32>
    %104 = vector.broadcast %101 : vector<1x7xf32> to vector<8x7xf32>
    %105 = arith.mulf %103, %104 : vector<8x7xf32>
    %106 = arith.addf %99, %105 : vector<8x7xf32>
    %c0_45 = arith.constant 0 : index
    %c6_46 = arith.constant 6 : index
    %c0_47 = arith.constant 0 : index
    %107 = vector.load %arg1[%c0_45, %c6_46, %c0_47] : memref<1x8x8xf32, #tpu.memory_space<vmem>>, vector<1x1x7xf32>
    %108 = vector.shape_cast %107 : vector<1x1x7xf32> to vector<1x7xf32>
    %109 = vector.extract_strided_slice %4 {offsets = [0, 2], sizes = [8, 1], strides = [1, 1]} : vector<8x4xf32> to vector<8x1xf32>
    %110 = vector.broadcast %109 : vector<8x1xf32> to vector<8x7xf32>
    %111 = vector.broadcast %108 : vector<1x7xf32> to vector<8x7xf32>
    %112 = arith.mulf %110, %111 : vector<8x7xf32>
    %113 = arith.addf %106, %112 : vector<8x7xf32>
    %c0_48 = arith.constant 0 : index
    %c7_49 = arith.constant 7 : index
    %c0_50 = arith.constant 0 : index
    %114 = vector.load %arg1[%c0_48, %c7_49, %c0_50] : memref<1x8x8xf32, #tpu.memory_space<vmem>>, vector<1x1x7xf32>
    %115 = vector.shape_cast %114 : vector<1x1x7xf32> to vector<1x7xf32>
    %116 = vector.extract_strided_slice %4 {offsets = [0, 3], sizes = [8, 1], strides = [1, 1]} : vector<8x4xf32> to vector<8x1xf32>
    %117 = vector.broadcast %116 : vector<8x1xf32> to vector<8x7xf32>
    %118 = vector.broadcast %115 : vector<1x7xf32> to vector<8x7xf32>
    %119 = arith.mulf %117, %118 : vector<8x7xf32>
    %120 = arith.addf %113, %119 : vector<8x7xf32>
    %c0_51 = arith.constant 0 : index
    %c0_52 = arith.constant 0 : index
    %c1_53 = arith.constant 1 : index
    %121 = vector.load %arg1[%c0_51, %c0_52, %c1_53] : memref<1x8x8xf32, #tpu.memory_space<vmem>>, vector<1x1x7xf32>
    %122 = vector.shape_cast %121 : vector<1x1x7xf32> to vector<1x7xf32>
    %123 = vector.extract_strided_slice %6 {offsets = [0, 0], sizes = [8, 1], strides = [1, 1]} : vector<8x4xf32> to vector<8x1xf32>
    %124 = vector.broadcast %123 : vector<8x1xf32> to vector<8x7xf32>
    %125 = vector.broadcast %122 : vector<1x7xf32> to vector<8x7xf32>
    %126 = arith.mulf %124, %125 : vector<8x7xf32>
    %127 = arith.addf %120, %126 : vector<8x7xf32>
    %c0_54 = arith.constant 0 : index
    %c1_55 = arith.constant 1 : index
    %c1_56 = arith.constant 1 : index
    %128 = vector.load %arg1[%c0_54, %c1_55, %c1_56] : memref<1x8x8xf32, #tpu.memory_space<vmem>>, vector<1x1x7xf32>
    %129 = vector.shape_cast %128 : vector<1x1x7xf32> to vector<1x7xf32>
    %130 = vector.extract_strided_slice %6 {offsets = [0, 1], sizes = [8, 1], strides = [1, 1]} : vector<8x4xf32> to vector<8x1xf32>
    %131 = vector.broadcast %130 : vector<8x1xf32> to vector<8x7xf32>
    %132 = vector.broadcast %129 : vector<1x7xf32> to vector<8x7xf32>
    %133 = arith.mulf %131, %132 : vector<8x7xf32>
    %134 = arith.addf %127, %133 : vector<8x7xf32>
    %c0_57 = arith.constant 0 : index
    %c2_58 = arith.constant 2 : index
    %c1_59 = arith.constant 1 : index
    %135 = vector.load %arg1[%c0_57, %c2_58, %c1_59] : memref<1x8x8xf32, #tpu.memory_space<vmem>>, vector<1x1x7xf32>
    %136 = vector.shape_cast %135 : vector<1x1x7xf32> to vector<1x7xf32>
    %137 = vector.extract_strided_slice %6 {offsets = [0, 2], sizes = [8, 1], strides = [1, 1]} : vector<8x4xf32> to vector<8x1xf32>
    %138 = vector.broadcast %137 : vector<8x1xf32> to vector<8x7xf32>
    %139 = vector.broadcast %136 : vector<1x7xf32> to vector<8x7xf32>
    %140 = arith.mulf %138, %139 : vector<8x7xf32>
    %141 = arith.addf %134, %140 : vector<8x7xf32>
    %c0_60 = arith.constant 0 : index
    %c3_61 = arith.constant 3 : index
    %c1_62 = arith.constant 1 : index
    %142 = vector.load %arg1[%c0_60, %c3_61, %c1_62] : memref<1x8x8xf32, #tpu.memory_space<vmem>>, vector<1x1x7xf32>
    %143 = vector.shape_cast %142 : vector<1x1x7xf32> to vector<1x7xf32>
    %144 = vector.extract_strided_slice %6 {offsets = [0, 3], sizes = [8, 1], strides = [1, 1]} : vector<8x4xf32> to vector<8x1xf32>
    %145 = vector.broadcast %144 : vector<8x1xf32> to vector<8x7xf32>
    %146 = vector.broadcast %143 : vector<1x7xf32> to vector<8x7xf32>
    %147 = arith.mulf %145, %146 : vector<8x7xf32>
    %148 = arith.addf %141, %147 : vector<8x7xf32>
    %c0_63 = arith.constant 0 : index
    %c4_64 = arith.constant 4 : index
    %c1_65 = arith.constant 1 : index
    %149 = vector.load %arg1[%c0_63, %c4_64, %c1_65] : memref<1x8x8xf32, #tpu.memory_space<vmem>>, vector<1x1x7xf32>
    %150 = vector.shape_cast %149 : vector<1x1x7xf32> to vector<1x7xf32>
    %151 = vector.extract_strided_slice %8 {offsets = [0, 0], sizes = [8, 1], strides = [1, 1]} : vector<8x4xf32> to vector<8x1xf32>
    %152 = vector.broadcast %151 : vector<8x1xf32> to vector<8x7xf32>
    %153 = vector.broadcast %150 : vector<1x7xf32> to vector<8x7xf32>
    %154 = arith.mulf %152, %153 : vector<8x7xf32>
    %155 = arith.addf %148, %154 : vector<8x7xf32>
    %c0_66 = arith.constant 0 : index
    %c5_67 = arith.constant 5 : index
    %c1_68 = arith.constant 1 : index
    %156 = vector.load %arg1[%c0_66, %c5_67, %c1_68] : memref<1x8x8xf32, #tpu.memory_space<vmem>>, vector<1x1x7xf32>
    %157 = vector.shape_cast %156 : vector<1x1x7xf32> to vector<1x7xf32>
    %158 = vector.extract_strided_slice %8 {offsets = [0, 1], sizes = [8, 1], strides = [1, 1]} : vector<8x4xf32> to vector<8x1xf32>
    %159 = vector.broadcast %158 : vector<8x1xf32> to vector<8x7xf32>
    %160 = vector.broadcast %157 : vector<1x7xf32> to vector<8x7xf32>
    %161 = arith.mulf %159, %160 : vector<8x7xf32>
    %162 = arith.addf %155, %161 : vector<8x7xf32>
    %c0_69 = arith.constant 0 : index
    %c6_70 = arith.constant 6 : index
    %c1_71 = arith.constant 1 : index
    %163 = vector.load %arg1[%c0_69, %c6_70, %c1_71] : memref<1x8x8xf32, #tpu.memory_space<vmem>>, vector<1x1x7xf32>
    %164 = vector.shape_cast %163 : vector<1x1x7xf32> to vector<1x7xf32>
    %165 = vector.extract_strided_slice %8 {offsets = [0, 2], sizes = [8, 1], strides = [1, 1]} : vector<8x4xf32> to vector<8x1xf32>
    %166 = vector.broadcast %165 : vector<8x1xf32> to vector<8x7xf32>
    %167 = vector.broadcast %164 : vector<1x7xf32> to vector<8x7xf32>
    %168 = arith.mulf %166, %167 : vector<8x7xf32>
    %169 = arith.addf %162, %168 : vector<8x7xf32>
    %c0_72 = arith.constant 0 : index
    %c7_73 = arith.constant 7 : index
    %c1_74 = arith.constant 1 : index
    %170 = vector.load %arg1[%c0_72, %c7_73, %c1_74] : memref<1x8x8xf32, #tpu.memory_space<vmem>>, vector<1x1x7xf32>
    %171 = vector.shape_cast %170 : vector<1x1x7xf32> to vector<1x7xf32>
    %172 = vector.extract_strided_slice %8 {offsets = [0, 3], sizes = [8, 1], strides = [1, 1]} : vector<8x4xf32> to vector<8x1xf32>
    %173 = vector.broadcast %172 : vector<8x1xf32> to vector<8x7xf32>
    %174 = vector.broadcast %171 : vector<1x7xf32> to vector<8x7xf32>
    %175 = arith.mulf %173, %174 : vector<8x7xf32>
    %176 = arith.addf %169, %175 : vector<8x7xf32>
    %177 = arith.maximumf %92, %176 : vector<8x7xf32>
    %cst = arith.constant 0.000000e+00 : f32
    %178 = vector.broadcast %cst : f32 to vector<8x7xf32>
    %179 = arith.cmpf ogt, %177, %178 : vector<8x7xf32>
    %cst_75 = arith.constant 0.00999999977 : f32
    %180 = vector.broadcast %cst_75 : f32 to vector<8x7xf32>
    %181 = arith.mulf %180, %177 : vector<8x7xf32>
    %182 = arith.select %179, %177, %181 : vector<8x7xi1>, vector<8x7xf32>
    %c0_76 = arith.constant 0 : index
    %c0_77 = arith.constant 0 : index
    %c0_78 = arith.constant 0 : index
    %183 = vector.load %arg4[%c0_76, %c0_77, %c0_78] : memref<1x8x7xf32, #tpu.memory_space<vmem>>, vector<1x8x7xf32>
    %184 = vector.shape_cast %183 : vector<1x8x7xf32> to vector<8x7xf32>
    %185 = vector.shape_cast %182 : vector<8x7xf32> to vector<1x8x7xf32>
    tpu.vector_store %arg4[%c0_76, %c0_77, %c0_78], %185 {strides = array<i32>} : memref<1x8x7xf32, #tpu.memory_space<vmem>>, vector<1x8x7xf32>,
    return
  }
  func.func @transform_0(%arg0: i32) -> (i32, i32, i32) {
    %c0_i32 = arith.constant 0 : i32
    %c0_i32_0 = arith.constant 0 : i32
    %c0_i32_1 = arith.constant 0 : i32
    return %arg0, %c0_i32, %c0_i32_0 : i32, i32, i32
  }
  func.func @transform_1(%arg0: i32) -> (i32, i32, i32) {
    %c0_i32 = arith.constant 0 : i32
    %c0_i32_0 = arith.constant 0 : i32
    %c0_i32_1 = arith.constant 0 : i32
    %c0_i32_2 = arith.constant 0 : i32
    return %c0_i32, %c0_i32_0, %c0_i32_1 : i32, i32, i32
  }
  func.func @transform_2(%arg0: i32) -> (i32, i32) {
    %c0_i32 = arith.constant 0 : i32
    %c0_i32_0 = arith.constant 0 : i32
    %c0_i32_1 = arith.constant 0 : i32
    return %c0_i32, %c0_i32_0 : i32, i32
  }
  func.func @transform_3(%arg0: i32) -> (i32, i32, i32) {
    %c0_i32 = arith.constant 0 : i32
    %c0_i32_0 = arith.constant 0 : i32
    %c0_i32_1 = arith.constant 0 : i32
    return %arg0, %c0_i32, %c0_i32_0 : i32, i32, i32
  }
}

</mosaic_0001>

<llo_original>
// kernel: tpu_custom_call.1
$region0: #{tpu_custom_call.1}
  #allocation0 [shape = 'u32[]', space=smem, size = 0x4, offset = 0x4, fixed_abs, tag = 'smem constant byte address 0x4 - core index']
  #allocation1 [shape = 'u32[144,128]{1,0:T(1,128)}', space=vmem, size = 0x12000, scoped, tag = 'internal scratch']
  %s0 = inlined_call_operand.vmem [shape: f32[2,8,8], index: 0, kind: input, shape index: {}]
  %s1 = inlined_call_operand.vmem [shape: f32[3,8,4], index: 1, kind: input, shape index: {}]
  %s2 = inlined_call_operand.vmem [shape: f32[8,1], index: 2, kind: input, shape index: {}]
  %s3 = inlined_call_operand.vmem [shape: f32[2,8,7], index: 3, kind: output, shape index: {}]
  %s4 = sld [smem:[#allocation0]]
  $region45: #{tpu_custom_call.1} parent=0
    _
  %s6 = ssub.s32 1, %s4
  %s7 = scalar_select 0, %s6, %s4
  loop: start=0, step=1, limit=4
  $region2: #{tpu_custom_call.1} parent=0 // loop_pre_header
    _
  $region3: #{tpu_custom_call.1} parent=0 // loop_header
    %s9 = sphi 0, %s13
    %p10 = scmp.ge.s32.totalorder %s9, 4
    %s19 = sphi 0, %s21
    %s22 = sphi 0, %s19
    %s23 = sphi 0, %s22
    %s39 = sphi 0, %s23
    %s43 = sphi 0, %s43
    %s45 = sphi 0, %s43
    %s46 = sphi 0, %s45
    %s60 = sphi 0, %s46
    %s64 = sphi 0, %s64
    %s66 = sphi 0, %s64
    %s67 = sphi 0, %s66
    %s81 = sphi 0, %s67
    %s87 = sphi 0, %s89
    %s90 = sphi 0, %s87
    %s91 = sphi 0, %s90
    %s107 = sphi 0, %s91
  $region4: #{tpu_custom_call.1} parent=0 // loop_header_branch
    %12 = sbr.rel (%p10) target = $region8
  $region5: #{tpu_custom_call.1} parent=0 // loop_body
    %s14 = ssub.s32 %s9, 1
    %s15 = ssub.s32 %s9, 2
    %s16 = sadd.s32 %s9, 1
    %s17 = ssub.s32 %s9, %s16
    %p18 = scmp.eq.s32.totalorder %s17, 0
    %s20 = sadd.s32 %s19, 1
    %s21 = scalar_select %p18, %s19, %s20
    %p24 = pneg %p18
    %p25 = scmp.eq.s32.totalorder %s9, 1
    %p26 = por %p24, %p25
    %p27 = scmp.ne.s32.totalorder %s19, %s22
    %p28 = scmp.eq.s32.totalorder %s9, 0
    %p29 = por %p27, %p28
    %p30 = scmp.ne.s32.totalorder %s19, %s22
    %p31 = scmp.eq.s32.totalorder %s14, 1
    %p32 = por %p30, %p31
    %p33 = scmp.ne.s32.totalorder %s22, %s23
    %p34 = scmp.eq.s32.totalorder %s14, 0
    %p35 = por %p33, %p34
    %p36 = scmp.ne.s32.totalorder %s22, %s23
    %p37 = scmp.eq.s32.totalorder %s15, 1
    %p38 = por %p36, %p37
    %p40 = scmp.ne.s32.totalorder %s23, %s39
    %p41 = scmp.eq.s32.totalorder %s15, 0
    %p42 = por %p40, %p41
    %s44 = sadd.s32 %s43, 1
    %p47 = scmp.eq.s32.totalorder %s9, 1
    %p48 = scmp.ne.s32.totalorder %s43, %s45
    %p49 = scmp.eq.s32.totalorder %s9, 0
    %p50 = por %p48, %p49
    %p51 = scmp.ne.s32.totalorder %s43, %s45
    %p52 = scmp.eq.s32.totalorder %s14, 1
    %p53 = por %p51, %p52
    %p54 = scmp.ne.s32.totalorder %s45, %s46
    %p55 = scmp.eq.s32.totalorder %s14, 0
    %p56 = por %p54, %p55
    %p57 = scmp.ne.s32.totalorder %s45, %s46
    %p58 = scmp.eq.s32.totalorder %s15, 1
    %p59 = por %p57, %p58
    %p61 = scmp.ne.s32.totalorder %s46, %s60
    %p62 = scmp.eq.s32.totalorder %s15, 0
    %p63 = por %p61, %p62
    %s65 = sadd.s32 %s64, 1
    %p68 = scmp.eq.s32.totalorder %s9, 1
    %p69 = scmp.ne.s32.totalorder %s64, %s66
    %p70 = scmp.eq.s32.totalorder %s9, 0
    %p71 = por %p69, %p70
    %p72 = scmp.ne.s32.totalorder %s64, %s66
    %p73 = scmp.eq.s32.totalorder %s14, 1
    %p74 = por %p72, %p73
    %p75 = scmp.ne.s32.totalorder %s66, %s67
    %p76 = scmp.eq.s32.totalorder %s14, 0
    %p77 = por %p75, %p76
    %p78 = scmp.ne.s32.totalorder %s66, %s67
    %p79 = scmp.eq.s32.totalorder %s15, 1
    %p80 = por %p78, %p79
    %p82 = scmp.ne.s32.totalorder %s67, %s81
    %p83 = scmp.eq.s32.totalorder %s15, 0
    %p84 = por %p82, %p83
    %s85 = ssub.s32 %s9, %s16
    %p86 = scmp.eq.s32.totalorder %s85, 0
    %s88 = sadd.s32 %s87, 1
    %s89 = scalar_select %p86, %s87, %s88
    %p92 = pneg %p86
    %p93 = scmp.eq.s32.totalorder %s9, 1
    %p94 = por %p92, %p93
    %p95 = scmp.ne.s32.totalorder %s87, %s90
    %p96 = scmp.eq.s32.totalorder %s9, 0
    %p97 = por %p95, %p96
    %p98 = scmp.ne.s32.totalorder %s87, %s90
    %p99 = scmp.eq.s32.totalorder %s14, 1
    %p100 = por %p98, %p99
    %p101 = scmp.ne.s32.totalorder %s90, %s91
    %p102 = scmp.eq.s32.totalorder %s14, 0
    %p103 = por %p101, %p102
    %p104 = scmp.ne.s32.totalorder %s90, %s91
    %p105 = scmp.eq.s32.totalorder %s15, 1
    %p106 = por %p104, %p105
    %p108 = scmp.ne.s32.totalorder %s91, %s107
    %p109 = scmp.eq.s32.totalorder %s15, 0
    %p110 = por %p108, %p109
    %p111 = scmp.le.s32.totalorder 1, %s9
    %p112 = scmp.lt.s32.totalorder %s9, 3
    %p113 = pnand %p111, %p112
    %p114 = pneg %p113
    // Predicated region
    $region9: #{tpu_custom_call.1} parent=5 // pred_check
      _
    $region10: #{tpu_custom_call.1} parent=5 // pred_check_branch
      %116 = sbr.rel (%p113) target = $region12
    $region11: #{tpu_custom_call.1} parent=5 // pred_region
      %s117 = ssub.s32 %s9, 1
      // Predicated region
      $region13: #{tpu_custom_call.1} parent=11 // pred_check
        %p118 = pneg %p56
      $region14: #{tpu_custom_call.1} parent=11 // pred_check_branch
        %120 = sbr.rel (%p118) target = $region16
      $region15: #{tpu_custom_call.1} parent=11 // pred_region
        _
      $region16: #{tpu_custom_call.1} parent=11 // pred_fallthru
        _
      // Predicated region
      $region17: #{tpu_custom_call.1} parent=11 // pred_check
        %p121 = pneg %p77
      $region18: #{tpu_custom_call.1} parent=11 // pred_check_branch
        %123 = sbr.rel (%p121) target = $region20
      $region19: #{tpu_custom_call.1} parent=11 // pred_region
        _
      $region20: #{tpu_custom_call.1} parent=11 // pred_fallthru
        _
    $region12: #{tpu_custom_call.1} parent=5 // pred_fallthru
      _
    %p124 = scmp.lt.s32.totalorder %s9, 2
    // Predicated region
    $region21: #{tpu_custom_call.1} parent=5 // pred_check
      %p125 = pneg %p124
    $region22: #{tpu_custom_call.1} parent=5 // pred_check_branch
      %127 = sbr.rel (%p125) target = $region24
    $region23: #{tpu_custom_call.1} parent=5 // pred_region
      // Predicated region
      $region25: #{tpu_custom_call.1} parent=23 // pred_check
        %p128 = pneg %p29
      $region26: #{tpu_custom_call.1} parent=23 // pred_check_branch
        %130 = sbr.rel (%p128) target = $region28
      $region27: #{tpu_custom_call.1} parent=23 // pred_region
        %p131 = scmp.lt.s32.totalorder %s9, 1
        %s132 = scalar_select %p131, %s9, 1
        %s133 = smul.addr %s132, 8
        %s134 = scalar_lea.vmem %s0, %s133
      $region28: #{tpu_custom_call.1} parent=23 // pred_fallthru
        _
    $region24: #{tpu_custom_call.1} parent=5 // pred_fallthru
      _
    %p135 = scmp.le.s32.totalorder 1, %s9
    %p136 = scmp.lt.s32.totalorder %s9, 3
    %p137 = pnand %p135, %p136
    %p138 = pneg %p137
    // Predicated region
    $region29: #{tpu_custom_call.1} parent=5 // pred_check
      _
    $region30: #{tpu_custom_call.1} parent=5 // pred_check_branch
      %140 = sbr.rel (%p137) target = $region32
    $region31: #{tpu_custom_call.1} parent=5 // pred_region
      %s141 = ssub.s32 %s9, 1
      %p142 = scmp.lt.s32.totalorder %s14, 1
      %s143 = scalar_select %p142, %s14, 1
      %s144 = smul.addr %s143, 8
      %s145 = scalar_lea.vmem %s0, %s144
      %p146 = pneg %p35
      %p147 = pneg %p32
      %p148 = pneg %p56
      %p149 = pneg %p53
      %p150 = pneg %p77
      %p151 = pneg %p74
      %p152 = pneg %p103
      %p153 = pneg %p100
      %p154 = scmp.lt.s32.totalorder %s14, 1
      %s155 = scalar_select %p154, %s14, 1
      %s156 = smul.addr %s155, 8
      %s157 = scalar_lea.vmem %s3, %s156
      %p158 = scmp.lt.s32.totalorder %s14, 1
      %s159 = scalar_select %p158, %s14, 1
      %s160 = smul.addr %s159, 8
      %s161 = scalar_lea.vmem %s0, %s160
      %p162 = scmp.lt.s32.totalorder %s14, 1
      %s163 = scalar_select %p162, %s14, 1
      %s164 = smul.addr %s163, 8
      %s165 = scalar_lea.vmem %s3, %s164
      %v166 = vld [vmem:[%s2] sm:$0xff]
      %168 = vset.pattern.permute.xlu0 0
      %169 = vperm.xlu0 %168, %v166
      %v170 = vpop.permute.xlu0 %169
      %v172 = vld [vmem:[%s1] sm:$0xff]
      %s173 = scalar_lea.vmem %s1, 8
      %v174 = vld [vmem:[%s173] sm:$0xff]
      %s175 = scalar_lea.vmem %s1, 16
      %v176 = vld [vmem:[%s175] sm:$0xff]
      %v177 = vld [vmem:[%s161] sm:$0x1]
      %179 = vset.pattern.permute.xlu0 0
      %180 = vperm.xlu0 %179, %v172
      %v181 = vpop.permute.xlu0 %180
      %v183 = vlaneseq
      %v184 = vshrl.u32 %v183, 7
      %v185 = vsub.s32 0, %v184
      %v186 = vrot.slane %v177, %v185
      %v187 = vmul.f32 %v181, %v186
      %v188 = vadd.f32 %v170, %v187
      %v189 = vld [vmem:[%s161 + $0x1] sm:$0x1]
      %190 = vset.pattern.permute.xlu0 1
      %191 = vperm.xlu0 %190, %v172
      %v192 = vpop.permute.xlu0 %191
      %v194 = vlaneseq
      %v195 = vshrl.u32 %v194, 7
      %v196 = vsub.s32 0, %v195
      %v197 = vrot.slane %v189, %v196
      %v198 = vmul.f32 %v192, %v197
      %v199 = vadd.f32 %v188, %v198
      %v200 = vld [vmem:[%s161 + $0x2] sm:$0x1]
      %201 = vset.pattern.permute.xlu0 2
      %202 = vperm.xlu0 %201, %v172
      %v203 = vpop.permute.xlu0 %202
      %v205 = vlaneseq
      %v206 = vshrl.u32 %v205, 7
      %v207 = vsub.s32 0, %v206
      %v208 = vrot.slane %v200, %v207
      %v209 = vmul.f32 %v203, %v208
      %v210 = vadd.f32 %v199, %v209
      %v211 = vld [vmem:[%s161 + $0x3] sm:$0x1]
      %212 = vset.pattern.permute.xlu0 3
      %213 = vperm.xlu0 %212, %v172
      %v214 = vpop.permute.xlu0 %213
      %v216 = vlaneseq
      %v217 = vshrl.u32 %v216, 7
      %v218 = vsub.s32 0, %v217
      %v219 = vrot.slane %v211, %v218
      %v220 = vmul.f32 %v214, %v219
      %v221 = vadd.f32 %v210, %v220
      %v222 = vld [vmem:[%s161 + $0x4] sm:$0x1]
      %224 = vset.pattern.permute.xlu0 0
      %225 = vperm.xlu0 %224, %v174
      %v226 = vpop.permute.xlu0 %225
      %v228 = vlaneseq
      %v229 = vshrl.u32 %v228, 7
      %v230 = vsub.s32 0, %v229
      %v231 = vrot.slane %v222, %v230
      %v232 = vmul.f32 %v226, %v231
      %v233 = vadd.f32 %v221, %v232
      %v234 = vld [vmem:[%s161 + $0x5] sm:$0x1]
      %235 = vset.pattern.permute.xlu0 1
      %236 = vperm.xlu0 %235, %v174
      %v237 = vpop.permute.xlu0 %236
      %v239 = vlaneseq
      %v240 = vshrl.u32 %v239, 7
      %v241 = vsub.s32 0, %v240
      %v242 = vrot.slane %v234, %v241
      %v243 = vmul.f32 %v237, %v242
      %v244 = vadd.f32 %v233, %v243
      %v245 = vld [vmem:[%s161 + $0x6] sm:$0x1]
      %246 = vset.pattern.permute.xlu0 2
      %247 = vperm.xlu0 %246, %v174
      %v248 = vpop.permute.xlu0 %247
      %v250 = vlaneseq
      %v251 = vshrl.u32 %v250, 7
      %v252 = vsub.s32 0, %v251
      %v253 = vrot.slane %v245, %v252
      %v254 = vmul.f32 %v248, %v253
      %v255 = vadd.f32 %v244, %v254
      %v256 = vld [vmem:[%s161 + $0x7] sm:$0x1]
      %257 = vset.pattern.permute.xlu0 3
      %258 = vperm.xlu0 %257, %v174
      %v259 = vpop.permute.xlu0 %258
      %v261 = vlaneseq
      %v262 = vshrl.u32 %v261, 7
      %v263 = vsub.s32 0, %v262
      %v264 = vrot.slane %v256, %v263
      %v265 = vmul.f32 %v259, %v264
      %v266 = vadd.f32 %v255, %v265
      %268 = vset.pattern.permute.xlu0 0
      %269 = vperm.xlu0 %268, %v176
      %v270 = vpop.permute.xlu0 %269
      %v272 = vmul.f32 %v270, %v186
      %274 = vrot.lane.b32.xlu0 %v272, 127
      %v275 = vpop.permute.xlu0 %274
      %v277 = vadd.f32 %v266, %v275
      %278 = vset.pattern.permute.xlu0 1
      %279 = vperm.xlu0 %278, %v176
      %v280 = vpop.permute.xlu0 %279
      %v282 = vmul.f32 %v280, %v197
      %284 = vrot.lane.b32.xlu0 %v282, 127
      %v285 = vpop.permute.xlu0 %284
      %v287 = vadd.f32 %v277, %v285
      %288 = vset.pattern.permute.xlu0 2
      %289 = vperm.xlu0 %288, %v176
      %v290 = vpop.permute.xlu0 %289
      %v292 = vmul.f32 %v290, %v208
      %294 = vrot.lane.b32.xlu0 %v292, 127
      %v295 = vpop.permute.xlu0 %294
      %v297 = vadd.f32 %v287, %v295
      %298 = vset.pattern.permute.xlu0 3
      %299 = vperm.xlu0 %298, %v176
      %v300 = vpop.permute.xlu0 %299
      %v302 = vmul.f32 %v300, %v219
      %304 = vrot.lane.b32.xlu0 %v302, 127
      %v305 = vpop.permute.xlu0 %304
      %v307 = vadd.f32 %v297, %v305
      %v308 = vmul.f32 %v181, %v231
      %v309 = vadd.f32 %v170, %v308
      %v310 = vmul.f32 %v192, %v242
      %v311 = vadd.f32 %v309, %v310
      %v312 = vmul.f32 %v203, %v253
      %v313 = vadd.f32 %v311, %v312
      %v314 = vmul.f32 %v214, %v264
      %v315 = vadd.f32 %v313, %v314
      %v316 = vmul.f32 %v226, %v186
      %318 = vrot.lane.b32.xlu0 %v316, 127
      %v319 = vpop.permute.xlu0 %318
      %v321 = vadd.f32 %v315, %v319
      %v322 = vmul.f32 %v237, %v197
      %324 = vrot.lane.b32.xlu0 %v322, 127
      %v325 = vpop.permute.xlu0 %324
      %v327 = vadd.f32 %v321, %v325
      %v328 = vmul.f32 %v248, %v208
      %330 = vrot.lane.b32.xlu0 %v328, 127
      %v331 = vpop.permute.xlu0 %330
      %v333 = vadd.f32 %v327, %v331
      %v334 = vmul.f32 %v259, %v219
      %336 = vrot.lane.b32.xlu0 %v334, 127
      %v337 = vpop.permute.xlu0 %336
      %v339 = vadd.f32 %v333, %v337
      %v340 = vmul.f32 %v270, %v231
      %342 = vrot.lane.b32.xlu0 %v340, 127
      %v343 = vpop.permute.xlu0 %342
      %v345 = vadd.f32 %v339, %v343
      %v346 = vmul.f32 %v280, %v242
      %348 = vrot.lane.b32.xlu0 %v346, 127
      %v349 = vpop.permute.xlu0 %348
      %v351 = vadd.f32 %v345, %v349
      %v352 = vmul.f32 %v290, %v253
      %354 = vrot.lane.b32.xlu0 %v352, 127
      %v355 = vpop.permute.xlu0 %354
      %v357 = vadd.f32 %v351, %v355
      %v358 = vmul.f32 %v300, %v264
      %360 = vrot.lane.b32.xlu0 %v358, 127
      %v361 = vpop.permute.xlu0 %360
      %v363 = vadd.f32 %v357, %v361
      %v364 = vmax.f32 %v307, %v363
      %vm365 = vcmp.gt.f32.partialorder %v364, 0.0
      %v366 = vmul.f32 %v364, 0.01
      %v367 = vsel %vm365, %v364, %v366
      %vm368 = vcmask 56320
      %369 = vst.msk [vmem:[%s165] sm:$0xff] %vm368, %v367
      %p370 = scmp.lt.s32.totalorder %s14, 1
      %s371 = scalar_select %p370, %s14, 1
      %s372 = smul.addr %s371, 8
      %s373 = scalar_lea.vmem %s3, %s372
      // Predicated region
      $region33: #{tpu_custom_call.1} parent=31 // pred_check
        %p374 = pneg %p100
      $region34: #{tpu_custom_call.1} parent=31 // pred_check_branch
        %376 = sbr.rel (%p374) target = $region36
      $region35: #{tpu_custom_call.1} parent=31 // pred_region
        _
      $region36: #{tpu_custom_call.1} parent=31 // pred_fallthru
        _
    $region32: #{tpu_custom_call.1} parent=5 // pred_fallthru
      _
    %p377 = scmp.le.s32.totalorder 2, %s9
    // Predicated region
    $region37: #{tpu_custom_call.1} parent=5 // pred_check
      %p378 = pneg %p377
    $region38: #{tpu_custom_call.1} parent=5 // pred_check_branch
      %380 = sbr.rel (%p378) target = $region40
    $region39: #{tpu_custom_call.1} parent=5 // pred_region
      %s381 = ssub.s32 %s9, 2
      // Predicated region
      $region41: #{tpu_custom_call.1} parent=39 // pred_check
        %p382 = pneg %p106
      $region42: #{tpu_custom_call.1} parent=39 // pred_check_branch
        %384 = sbr.rel (%p382) target = $region44
      $region43: #{tpu_custom_call.1} parent=39 // pred_region
        %p385 = scmp.lt.s32.totalorder %s15, 1
        %s386 = scalar_select %p385, %s15, 1
        %s387 = smul.addr %s386, 8
        %s388 = scalar_lea.vmem %s3, %s387
      $region44: #{tpu_custom_call.1} parent=39 // pred_fallthru
        _
    $region40: #{tpu_custom_call.1} parent=5 // pred_fallthru
      _
  $region6: #{tpu_custom_call.1} parent=0 // loop_footer
    %s13 = sadd.s32 1, %s9
  $region7: #{tpu_custom_call.1} parent=0 // loop_footer_branch
    %8 = sbr.rel target = $region3
  $region8: #{tpu_custom_call.1} parent=0 // loop_exit
    _

</llo_original>
